<compile_context>
chip_gen: v5e
topology: v5e:2x2
jax: 0.10.0
libtpu: 0.0.40
codegen_flags: <defaults>
</compile_context>

<pallas_src>
import jax
import jax.numpy as jnp
from jax.experimental import pallas as pl
from jax.experimental.pallas import tpu as pltpu


def _leaky_relu(x, negative_slope=0.2):
    # max(x, a*x) == leaky_relu(x) for 0 <= a <= 1; 2 VALU ops instead of 3.
    return jnp.maximum(x, negative_slope * x)


def generator_mlp_kernel(x_ref, w0_ref, b0_ref, w1_ref, b1_ref, w2_ref, b2_ref,
                         o_ref):
    """Fused Generator MLP on one lane-dense batch tile.

    Shapes inside the kernel (Bt = batch tile width, a multiple of 128):
      x:  (1, Bt)          w0: (32, 1)   b0: (32, 1)
                           w1: (32, 32)  b1: (32, 1)
                           w2: (1, 32)   b2: (1, 1)
      out: (1, Bt)
    """
    x = x_ref[...]                                              # (1, Bt)

    # Layer 0: Linear(1 -> 32). K=1 contraction -> VPU broadcast outer product
    # (a matmul here would use a tiny fraction of the MXU and cost MRF traffic).
    h0 = _leaky_relu(w0_ref[...] * x + b0_ref[...])             # (32, Bt)

    # Layer 1: Linear(32 -> 32) on the MXU, f32 accumulation.
    h1 = jnp.dot(w1_ref[...], h0, preferred_element_type=jnp.float32)
    h1 = _leaky_relu(h1 + b1_ref[...])                          # (32, Bt)

    # Layer 2: Linear(32 -> 1) on the MXU; output stays lane-dense (1, Bt).
    out = jnp.dot(w2_ref[...], h1, preferred_element_type=jnp.float32)
    o_ref[...] = (out + b2_ref[...]).astype(o_ref.dtype)


def generator_forward(x, params, *, max_batch_tile=32768):
    """x: (B, 1) float32. Returns (B, 1) float32, matching the PyTorch module."""
    B = x.shape[0]
    dtype = x.dtype

    # PyTorch-style (out_features, in_features) weights; column-major activations.
    w0 = params["w0"]                        # (32, 1)
    w1 = params["w1"]                        # (32, 32)
    w2 = params["w2"]                        # (1, 32)
    b0 = params["b0"].reshape(32, 1)
    b1 = params["b1"].reshape(32, 1)
    b2 = params["b2"].reshape(1, 1)

    # Lane-dense layout: batch in the last (lane) dim (cheap contiguous reshape).
    x_t = x.reshape(B)[None, :]              # (1, B)

    # Tile choice: as large as allowed (amortize per-step overhead), aligned to
    # 128 lanes.  No explicit padding: grid uses cdiv and the boundary block is
    # handled by Pallas (masked writes; OOB reads are discarded garbage).
    LANE = 128
    b128 = ((B + LANE - 1) // LANE) * LANE
    b_tile = min(max_batch_tile, b128)
    # v7x megacore: ensure >= 2 grid steps when there is enough work so that
    # dimension_semantics=("parallel",) can shard the batch across 2 TCs.
    if b128 >= 2 * LANE:
        b_tile = min(b_tile, max(LANE, (b128 // 2 // LANE) * LANE))
    grid = (pl.cdiv(B, b_tile),)

    # Weights/biases: full-array blocks with constant index_map -> VMEM-resident.
    def resident(arr):
        return pl.BlockSpec(arr.shape, lambda i: (0, 0))

    n_param_bytes = 4 * (32 * 1 + 32 + 32 * 32 + 32 + 1 * 32 + 1)
    cost = pl.CostEstimate(
        flops=2 * (1 * 32 + 32 * 32 + 32 * 1) * B,
        transcendentals=0,
        bytes_accessed=8 * B + n_param_bytes,
    )

    out_t = pl.pallas_call(
        generator_mlp_kernel,
        out_shape=jax.ShapeDtypeStruct((1, B), dtype),
        grid=grid,
        in_specs=[
            pl.BlockSpec((1, b_tile), lambda i: (0, i)),   # x batch tile
            resident(w0), resident(b0),
            resident(w1), resident(b1),
            resident(w2), resident(b2),
        ],
        out_specs=pl.BlockSpec((1, b_tile), lambda i: (0, i)),
        compiler_params=pltpu.CompilerParams(
            dimension_semantics=("parallel",),
            # Big tiles (up to 32K lanes) use ~14 MiB of per-step VMEM; raise
            # the scoped limit (v5e defaults to 16 MiB) but stay well under
            # v7x's 64 MiB physical VMEM.
            vmem_limit_bytes=48 * 1024 * 1024,
        ),
        cost_estimate=cost,
    )(x_t, w0, b0, w1, b1, w2, b2)

    return out_t.reshape(B, 1)


def init_params(key):
    """Deterministic init mimicking nn.Linear's U(-1/sqrt(fan_in), 1/sqrt(fan_in)).

    Weights stored PyTorch-style as (out_features, in_features).
    """
    ks = jax.random.split(key, 6)

    def linear(kw, kb, fan_in, fan_out):
        bound = 1.0 / jnp.sqrt(jnp.float32(fan_in))
        w = jax.random.uniform(kw, (fan_out, fan_in), jnp.float32, -bound, bound)
        b = jax.random.uniform(kb, (fan_out,), jnp.float32, -bound, bound)
        return w, b

    w0, b0 = linear(ks[0], ks[1], 1, 32)
    w1, b1 = linear(ks[2], ks[3], 32, 32)
    w2, b2 = linear(ks[4], ks[5], 32, 1)
    return dict(w0=w0, b0=b0, w1=w1, b1=b1, w2=w2, b2=b2)


def reference_forward(x, p):
    def lrelu(v):
        return jnp.where(v >= 0, v, 0.2 * v)
    h0 = lrelu(x @ p["w0"].T + p["b0"])
    h1 = lrelu(h0 @ p["w1"].T + p["b1"])
    return h1 @ p["w2"].T + p["b2"]


if __name__ == "__main__":
    key = jax.random.PRNGKey(0)
    k_params, k_x1, k_x2 = jax.random.split(key, 3)

    params = init_params(k_params)

    # Small batch of 1-d samples (n_features = 1), matching the module.
    B = 8
    x = jax.random.normal(k_x1, (B, 1), jnp.float32)
    out = jax.block_until_ready(generator_forward(x, params))
    ref = reference_forward(x, params)
    assert out.shape == (B, 1)
    assert jnp.allclose(out, ref, atol=1e-5, rtol=1e-5)

    # Second check: non-multiple-of-128 batch -> multi-step grid + masked tail.
    B2 = 200
    x2 = jax.random.normal(k_x2, (B2, 1), jnp.float32)
    out2 = jax.block_until_ready(generator_forward(x2, params))
    ref2 = reference_forward(x2, params)
    assert out2.shape == (B2, 1)
    assert jnp.allclose(out2, ref2, atol=1e-5, rtol=1e-5)

    print("KERNEL_OK")
</pallas_src>

<mosaic_0001>
module attributes {stable_mosaic.version = 11 : i64} {
  func.func @generator_mlp_kernel(%arg0: i32, %arg1: memref<1x128xf32, #tpu.memory_space<vmem>>, %arg2: memref<32x1xf32, #tpu.memory_space<vmem>>, %arg3: memref<32x1xf32, #tpu.memory_space<vmem>>, %arg4: memref<32x32xf32, #tpu.memory_space<vmem>>, %arg5: memref<32x1xf32, #tpu.memory_space<vmem>>, %arg6: memref<1x32xf32, #tpu.memory_space<vmem>>, %arg7: memref<1x1xf32, #tpu.memory_space<vmem>>, %arg8: memref<1x128xf32, #tpu.memory_space<vmem>>) attributes {dimension_semantics = [#tpu.dimension_semantics<parallel>], iteration_bounds = array<i64: 1>, scalar_prefetch = 0 : i64, scratch_operands = 0 : i64, tpu.core_type = #tpu.core_type<tc>, window_params = [{transform_indices = @transform_0, window_bounds = array<i64: 1, 128>}, {pipeline_mode = #tpu.pipeline_mode<synchronous>, transform_indices = @transform_1, window_bounds = array<i64: 32, 1>}, {pipeline_mode = #tpu.pipeline_mode<synchronous>, transform_indices = @transform_2, window_bounds = array<i64: 32, 1>}, {pipeline_mode = #tpu.pipeline_mode<synchronous>, transform_indices = @transform_3, window_bounds = array<i64: 32, 32>}, {pipeline_mode = #tpu.pipeline_mode<synchronous>, transform_indices = @transform_4, window_bounds = array<i64: 32, 1>}, {pipeline_mode = #tpu.pipeline_mode<synchronous>, transform_indices = @transform_5, window_bounds = array<i64: 1, 32>}, {pipeline_mode = #tpu.pipeline_mode<synchronous>, transform_indices = @transform_6, window_bounds = array<i64: 1, 1>}, {transform_indices = @transform_7, window_bounds = array<i64: 1, 128>}]} {
    %c0 = arith.constant 0 : index
    %c0_0 = arith.constant 0 : index
    %0 = vector.load %arg1[%c0, %c0_0] : memref<1x128xf32, #tpu.memory_space<vmem>>, vector<1x128xf32>
    %c0_1 = arith.constant 0 : index
    %c0_2 = arith.constant 0 : index
    %1 = vector.load %arg2[%c0_1, %c0_2] : memref<32x1xf32, #tpu.memory_space<vmem>>, vector<32x1xf32>
    %2 = vector.broadcast %1 : vector<32x1xf32> to vector<32x128xf32>
    %3 = vector.broadcast %0 : vector<1x128xf32> to vector<32x128xf32>
    %4 = arith.mulf %2, %3 : vector<32x128xf32>
    %c0_3 = arith.constant 0 : index
    %c0_4 = arith.constant 0 : index
    %5 = vector.load %arg3[%c0_3, %c0_4] : memref<32x1xf32, #tpu.memory_space<vmem>>, vector<32x1xf32>
    %6 = vector.broadcast %5 : vector<32x1xf32> to vector<32x128xf32>
    %7 = arith.addf %4, %6 : vector<32x128xf32>
    %cst = arith.constant 2.000000e-01 : f32
    %8 = vector.broadcast %cst : f32 to vector<32x128xf32>
    %9 = arith.mulf %8, %7 : vector<32x128xf32>
    %10 = arith.maximumf %7, %9 : vector<32x128xf32>
    %c0_5 = arith.constant 0 : index
    %c0_6 = arith.constant 0 : index
    %11 = vector.load %arg4[%c0_5, %c0_6] : memref<32x32xf32, #tpu.memory_space<vmem>>, vector<32x32xf32>
    %cst_7 = arith.constant dense<0.000000e+00> : vector<32x128xf32>
    %12 = tpu.matmul %11, %10, %cst_7 {dimension_numbers = #tpu.dot_dimension_numbers<[1], [0], [0], [1], [0, 0, 1, 1], [], []>} : vector<32x32xf32>, vector<32x128xf32>, vector<32x128xf32> -> vector<32x128xf32>
    %c0_8 = arith.constant 0 : index
    %c0_9 = arith.constant 0 : index
    %13 = vector.load %arg5[%c0_8, %c0_9] : memref<32x1xf32, #tpu.memory_space<vmem>>, vector<32x1xf32>
    %14 = vector.broadcast %13 : vector<32x1xf32> to vector<32x128xf32>
    %15 = arith.addf %12, %14 : vector<32x128xf32>
    %cst_10 = arith.constant 2.000000e-01 : f32
    %16 = vector.broadcast %cst_10 : f32 to vector<32x128xf32>
    %17 = arith.mulf %16, %15 : vector<32x128xf32>
    %18 = arith.maximumf %15, %17 : vector<32x128xf32>
    %c0_11 = arith.constant 0 : index
    %c0_12 = arith.constant 0 : index
    %19 = vector.load %arg6[%c0_11, %c0_12] : memref<1x32xf32, #tpu.memory_space<vmem>>, vector<1x32xf32>
    %cst_13 = arith.constant dense<0.000000e+00> : vector<1x128xf32>
    %20 = tpu.matmul %19, %18, %cst_13 {dimension_numbers = #tpu.dot_dimension_numbers<[1], [0], [0], [1], [0, 0, 1, 1], [], []>} : vector<1x32xf32>, vector<32x128xf32>, vector<1x128xf32> -> vector<1x128xf32>
    %c0_14 = arith.constant 0 : index
    %c0_15 = arith.constant 0 : index
    %21 = vector.load %arg7[%c0_14, %c0_15] : memref<1x1xf32, #tpu.memory_space<vmem>>, vector<1x1xf32>
    %22 = vector.broadcast %21 : vector<1x1xf32> to vector<1x128xf32>
    %23 = arith.addf %20, %22 : vector<1x128xf32>
    %c0_16 = arith.constant 0 : index
    %c0_17 = arith.constant 0 : index
    %24 = vector.load %arg8[%c0_16, %c0_17] : memref<1x128xf32, #tpu.memory_space<vmem>>, vector<1x128xf32>
    tpu.vector_store %arg8[%c0_16, %c0_17], %23 {strides = array<i32>} : memref<1x128xf32, #tpu.memory_space<vmem>>, vector<1x128xf32>,
    return
  }
  func.func @transform_0(%arg0: i32) -> (i32, i32) {
    %c0_i32 = arith.constant 0 : i32
    %c0_i32_0 = arith.constant 0 : i32
    return %c0_i32, %arg0 : i32, i32
  }
  func.func @transform_1(%arg0: i32) -> (i32, i32) {
    %c0_i32 = arith.constant 0 : i32
    %c0_i32_0 = arith.constant 0 : i32
    %c0_i32_1 = arith.constant 0 : i32
    return %c0_i32, %c0_i32_0 : i32, i32
  }
  func.func @transform_2(%arg0: i32) -> (i32, i32) {
    %c0_i32 = arith.constant 0 : i32
    %c0_i32_0 = arith.constant 0 : i32
    %c0_i32_1 = arith.constant 0 : i32
    return %c0_i32, %c0_i32_0 : i32, i32
  }
  func.func @transform_3(%arg0: i32) -> (i32, i32) {
    %c0_i32 = arith.constant 0 : i32
    %c0_i32_0 = arith.constant 0 : i32
    %c0_i32_1 = arith.constant 0 : i32
    return %c0_i32, %c0_i32_0 : i32, i32
  }
  func.func @transform_4(%arg0: i32) -> (i32, i32) {
    %c0_i32 = arith.constant 0 : i32
    %c0_i32_0 = arith.constant 0 : i32
    %c0_i32_1 = arith.constant 0 : i32
    return %c0_i32, %c0_i32_0 : i32, i32
  }
  func.func @transform_5(%arg0: i32) -> (i32, i32) {
    %c0_i32 = arith.constant 0 : i32
    %c0_i32_0 = arith.constant 0 : i32
    %c0_i32_1 = arith.constant 0 : i32
    return %c0_i32, %c0_i32_0 : i32, i32
  }
  func.func @transform_6(%arg0: i32) -> (i32, i32) {
    %c0_i32 = arith.constant 0 : i32
    %c0_i32_0 = arith.constant 0 : i32
    %c0_i32_1 = arith.constant 0 : i32
    return %c0_i32, %c0_i32_0 : i32, i32
  }
  func.func @transform_7(%arg0: i32) -> (i32, i32) {
    %c0_i32 = arith.constant 0 : i32
    %c0_i32_0 = arith.constant 0 : i32
    return %c0_i32, %arg0 : i32, i32
  }
}

</mosaic_0001>

<llo_original>
// kernel: tpu_custom_call.1
$region0: #{tpu_custom_call.1}
  #allocation0 [shape = 'u32[]', space=smem, size = 0x4, offset = 0x4, fixed_abs, tag = 'smem constant byte address 0x4 - core index']
  #allocation1 [shape = 'u32[72,128]{1,0:T(1,128)}', space=vmem, size = 0x9000, scoped, tag = 'internal scratch']
  #allocation2 [shape = 'f32[1,1]{1,0:T(1,128)S(1)}', space=vmem, size = 0x200, scoped, tag = 'scoped memory for tpu_custom_call.1']
  %s0 = inlined_call_operand.vmem [shape: f32[1,8], index: 0, kind: input, shape index: {}]
  %s1 = inlined_call_operand.vmem [shape: f32[32,1], index: 1, kind: input, shape index: {}]
  %s2 = inlined_call_operand.vmem [shape: f32[32,1], index: 2, kind: input, shape index: {}]
  %s3 = inlined_call_operand.vmem [shape: f32[32,32], index: 3, kind: input, shape index: {}]
  %s4 = inlined_call_operand.vmem [shape: f32[32,1], index: 4, kind: input, shape index: {}]
  %s5 = inlined_call_operand.vmem [shape: f32[1,32], index: 5, kind: input, shape index: {}]
  %s6 = inlined_call_operand.<no memory space> [shape: f32[1,1], index: 6, kind: input, shape index: {}]
  %s7 = inlined_call_operand.hbm [shape: f32[1,8], index: 7, kind: output, shape index: {}]
  %s8 = sld [smem:[#allocation0]]
  $region38: #{tpu_custom_call.1} parent=0
    _
  %s10 = ssub.s32 1, %s8
  %s11 = scalar_select 0, %s10, %s8
  %v12 = vstv %s6
  %13 = vst [vmem:[#allocation2] sm:$0x1] %v12
  $region1: #{tpu_custom_call.1} parent=0
    #allocation3 [shape = 'u8[512]{0}', space=vmem, size = 0x400, scoped, tag = 'output window, operand 0, single buffered']
    #allocation4 [shape = 's32[1]{0}', space=sflag, size = 0x4, scoped, tag = 'scoped memory for tpu_custom_call.1']
    %14 = vsyncpa [#allocation4], 0
    // Predicated region
    $region2: #{tpu_custom_call.1} parent=1 // pred_check
      _
    $region3: #{tpu_custom_call.1} parent=1 // pred_check_branch
      %16 = sbr.rel (0) target = $region5
    $region4: #{tpu_custom_call.1} parent=1 // pred_region
      _
    $region5: #{tpu_custom_call.1} parent=1 // pred_fallthru
      _
    // Predicated region
    $region6: #{tpu_custom_call.1} parent=1 // pred_check
      _
    $region7: #{tpu_custom_call.1} parent=1 // pred_check_branch
      %18 = sbr.rel (0) target = $region9
    $region8: #{tpu_custom_call.1} parent=1 // pred_region
      _
    $region9: #{tpu_custom_call.1} parent=1 // pred_fallthru
      _
    // Predicated region
    $region10: #{tpu_custom_call.1} parent=1 // pred_check
      _
    $region11: #{tpu_custom_call.1} parent=1 // pred_check_branch
      %20 = sbr.rel (0) target = $region13
    $region12: #{tpu_custom_call.1} parent=1 // pred_region
      _
    $region13: #{tpu_custom_call.1} parent=1 // pred_fallthru
      _
    // Predicated region
    $region14: #{tpu_custom_call.1} parent=1 // pred_check
      _
    $region15: #{tpu_custom_call.1} parent=1 // pred_check_branch
      %22 = sbr.rel (0) target = $region17
    $region16: #{tpu_custom_call.1} parent=1 // pred_region
      _
    $region17: #{tpu_custom_call.1} parent=1 // pred_fallthru
      _
    // Predicated region
    $region18: #{tpu_custom_call.1} parent=1 // pred_check
      _
    $region19: #{tpu_custom_call.1} parent=1 // pred_check_branch
      %24 = sbr.rel (0) target = $region21
    $region20: #{tpu_custom_call.1} parent=1 // pred_region
      _
    $region21: #{tpu_custom_call.1} parent=1 // pred_fallthru
      _
    // Predicated region
    $region22: #{tpu_custom_call.1} parent=1 // pred_check
      _
    $region23: #{tpu_custom_call.1} parent=1 // pred_check_branch
      %26 = sbr.rel (0) target = $region25
    $region24: #{tpu_custom_call.1} parent=1 // pred_region
      _
    $region25: #{tpu_custom_call.1} parent=1 // pred_fallthru
      _
    // Predicated region
    $region26: #{tpu_custom_call.1} parent=1 // pred_check
      _
    $region27: #{tpu_custom_call.1} parent=1 // pred_check_branch
      %28 = sbr.rel (0) target = $region29
    $region28: #{tpu_custom_call.1} parent=1 // pred_region
      _
    $region29: #{tpu_custom_call.1} parent=1 // pred_fallthru
      _
    %v29 = vld [vmem:[%s0] sm:$0x1]
    %v30 = vld [vmem:[%s1] sm:$0xff]
    %v31 = vld [vmem:[%s1 + $0x8] sm:$0xff]
    %v32 = vld [vmem:[%s1 + $0x10] sm:$0xff]
    %v33 = vld [vmem:[%s1 + $0x18] sm:$0xff]
    %35 = vset.pattern.permute.xlu0 0
    %36 = vperm.xlu0 %35, %v30
    %v37 = vpop.permute.xlu0 %36
    %40 = vset.pattern.permute.xlu0 0
    %41 = vperm.xlu0 %40, %v31
    %v42 = vpop.permute.xlu0 %41
    %45 = vset.pattern.permute.xlu0 0
    %46 = vperm.xlu0 %45, %v32
    %v47 = vpop.permute.xlu0 %46
    %50 = vset.pattern.permute.xlu0 0
    %51 = vperm.xlu0 %50, %v33
    %v52 = vpop.permute.xlu0 %51
    %v55 = vperm.slane %v29, 0
    %v57 = vmul.f32 %v37, %v55
    %v58 = vmul.f32 %v42, %v55
    %v59 = vmul.f32 %v47, %v55
    %v60 = vmul.f32 %v52, %v55
    %v61 = vld [vmem:[%s2] sm:$0xff]
    %v62 = vld [vmem:[%s2 + $0x8] sm:$0xff]
    %v63 = vld [vmem:[%s2 + $0x10] sm:$0xff]
    %v64 = vld [vmem:[%s2 + $0x18] sm:$0xff]
    %66 = vset.pattern.permute.xlu0 0
    %67 = vperm.xlu0 %66, %v61
    %v68 = vpop.permute.xlu0 %67
    %71 = vset.pattern.permute.xlu0 0
    %72 = vperm.xlu0 %71, %v62
    %v73 = vpop.permute.xlu0 %72
    %76 = vset.pattern.permute.xlu0 0
    %77 = vperm.xlu0 %76, %v63
    %v78 = vpop.permute.xlu0 %77
    %81 = vset.pattern.permute.xlu0 0
    %82 = vperm.xlu0 %81, %v64
    %v83 = vpop.permute.xlu0 %82
    %v85 = vadd.f32 %v57, %v68
    %v86 = vadd.f32 %v58, %v73
    %v87 = vadd.f32 %v59, %v78
    %v88 = vadd.f32 %v60, %v83
    %v89 = vmul.f32 %v85, 0.2
    %v90 = vmul.f32 %v86, 0.2
    %v91 = vmul.f32 %v87, 0.2
    %v92 = vmul.f32 %v88, 0.2
    %v93 = vmax.f32 %v85, %v89
    %v94 = vmax.f32 %v86, %v90
    %v95 = vmax.f32 %v87, %v91
    %v96 = vmax.f32 %v88, %v92
    %v97 = vld [vmem:[%s3] sm:$0xff]
    %v98 = vld [vmem:[%s3 + $0x8] sm:$0xff]
    %v99 = vld [vmem:[%s3 + $0x10] sm:$0xff]
    %v100 = vld [vmem:[%s3 + $0x18] sm:$0xff]
    %v101 = vld [vmem:[%s4] sm:$0xff]
    %v102 = vld [vmem:[%s4 + $0x8] sm:$0xff]
    %v103 = vld [vmem:[%s4 + $0x10] sm:$0xff]
    %v104 = vld [vmem:[%s4 + $0x18] sm:$0xff]
    %106 = vset.pattern.permute.xlu0 0
    %107 = vperm.xlu0 %106, %v101
    %v108 = vpop.permute.xlu0 %107
    %111 = vset.pattern.permute.xlu0 0
    %112 = vperm.xlu0 %111, %v102
    %v113 = vpop.permute.xlu0 %112
    %116 = vset.pattern.permute.xlu0 0
    %117 = vperm.xlu0 %116, %v103
    %v118 = vpop.permute.xlu0 %117
    %121 = vset.pattern.permute.xlu0 0
    %122 = vperm.xlu0 %121, %v104
    %v123 = vpop.permute.xlu0 %122
    %vm125 = vcmask 261120
    %v127 = vsel %vm125, %v97, 0
    %v130 = vsel %vm125, %v98, 0
    %v133 = vsel %vm125, %v99, 0
    %v136 = vsel %vm125, %v100, 0
    %138 = vmatpush.msra.mxu0 0.0
    %139 = vmatpush.msra.mxu0 0.0
    %140 = vmatpush.msra.mxu0 0.0
    %141 = vmatpush.msra.mxu0 0.0
    %142 = vmatpush.msra.mxu0 0.0
    %143 = vmatpush.msra.mxu0 0.0
    %144 = vmatpush.msra.mxu0 0.0
    %145 = vmatpush.msra.mxu0 0.0
    %146 = vmatpush.msra.mxu0 0.0
    %147 = vmatpush.msra.mxu0 0.0
    %148 = vmatpush.msra.mxu0 0.0
    %149 = vmatpush.msra.mxu0 0.0
    %150 = vmatpush.msra.mxu0 %v96
    %151 = vmatpush.msra.mxu0 %v95
    %152 = vmatpush.msra.mxu0 %v94
    %153 = vmatpush.msra.mxu0 %v93
    %154 = vmatmul.f32.gmra.mxu0 %v127
    %v155 = vpop.f32.mrf.mxu0
    %v156 = vadd.f32 %v108, %v155
    %157 = vmatmul.f32.gmra.mxu0 %v130
    %v158 = vpop.f32.mrf.mxu0
    %v159 = vadd.f32 %v113, %v158
    %160 = vmatmul.f32.gmra.mxu0 %v133
    %v161 = vpop.f32.mrf.mxu0
    %v162 = vadd.f32 %v118, %v161
    %163 = vmatmul.f32.gmra.mxu0 %v136
    %v164 = vpop.f32.mrf.mxu0
    %v165 = vadd.f32 %v123, %v164
    %166 = vdwg.mxu0
    %v167 = vmul.f32 %v156, 0.2
    %v168 = vmul.f32 %v159, 0.2
    %v169 = vmul.f32 %v162, 0.2
    %v170 = vmul.f32 %v165, 0.2
    %v171 = vmax.f32 %v156, %v167
    %v172 = vmax.f32 %v159, %v168
    %v173 = vmax.f32 %v162, %v169
    %v174 = vmax.f32 %v165, %v170
    %v175 = vld [vmem:[%s5] sm:$0x1]
    %v176 = vld [vmem:[#allocation2] sm:$0x1]
    %178 = vset.pattern.permute.xlu0 0
    %179 = vperm.xlu0 %178, %v176
    %v180 = vpop.permute.xlu0 %179
    %v182 = vperm.slane %v180, 0
    %v184 = vsel %vm125, %v175, 0
    %186 = vmatpush.msra.mxu0 0.0
    %187 = vmatpush.msra.mxu0 0.0
    %188 = vmatpush.msra.mxu0 0.0
    %189 = vmatpush.msra.mxu0 0.0
    %190 = vmatpush.msra.mxu0 0.0
    %191 = vmatpush.msra.mxu0 0.0
    %192 = vmatpush.msra.mxu0 0.0
    %193 = vmatpush.msra.mxu0 0.0
    %194 = vmatpush.msra.mxu0 0.0
    %195 = vmatpush.msra.mxu0 0.0
    %196 = vmatpush.msra.mxu0 0.0
    %197 = vmatpush.msra.mxu0 0.0
    %198 = vmatpush.msra.mxu0 %v174
    %199 = vmatpush.msra.mxu0 %v173
    %200 = vmatpush.msra.mxu0 %v172
    %201 = vmatpush.msra.mxu0 %v171
    %202 = vmatmul.f32.gmra.mxu0 %v184
    %v203 = vpop.f32.mrf.mxu0
    %v204 = vadd.f32 %v182, %v203
    %205 = vdwg.mxu0
    %206 = vst [vmem:[#allocation3] sm:$0x1] %v204
    // Predicated region
    $region30: #{tpu_custom_call.1} parent=1 // pred_check
      _
    $region31: #{tpu_custom_call.1} parent=1 // pred_check_branch
      %208 = sbr.rel (0) target = $region33
    $region32: #{tpu_custom_call.1} parent=1 // pred_region
      %210 = vsyncadd [#allocation4], 0
      %s212 = sshll.u32 [#allocation3], 4
      %s213 = int_to_ptr.vmem [resolvable:$true] %s212
      %s214 = sshll.u32 %s7, 4
      %s215 = int_to_ptr.hbm [resolvable:$true] %s214
      %217 = dma.vmem_to_hbm [thread:$0]  %s213, 16, %s215, [#allocation4]
    $region33: #{tpu_custom_call.1} parent=1 // pred_fallthru
      _
    // Predicated region
    $region34: #{tpu_custom_call.1} parent=1 // pred_check
      _
    $region35: #{tpu_custom_call.1} parent=1 // pred_check_branch
      %219 = sbr.rel (0) target = $region37
    $region36: #{tpu_custom_call.1} parent=1 // pred_region
      %221 = dma.done [#allocation4], 16
    $region37: #{tpu_custom_call.1} parent=1 // pred_fallthru
      _
    %222 = vsyncpa [#allocation4], 1

</llo_original>
